<compile_context>
chip_gen: v5e
topology: v5e:2x2
jax: 0.10.0
libtpu: 0.0.40
codegen_flags: <defaults>
</compile_context>

<pallas_src>
import jax
import jax.numpy as jnp
from jax import lax
from jax.experimental import pallas as pl
from jax.experimental.pallas import tpu as pltpu


def _simplenet_kernel(x_ref, fmean_ref, out_ref):
    # x_ref:     (b_tile, D)  float32
    # fmean_ref: (NC, D)      float32   (already K-averaged in the wrapper)
    # out_ref:   (b_tile, NC) float32
    #
    # Contract on D of both operands (x @ fmean.T) without materializing a
    # transpose: dim 1 of lhs with dim 1 of rhs.
    score = lax.dot_general(
        x_ref[...],
        fmean_ref[...],
        dimension_numbers=(((1,), (1,)), ((), ())),
        preferred_element_type=jnp.float32,
    )  # (b_tile, NC)

    # Numerically stable log_softmax over the class axis (all f32 — v5e has
    # no bf16 VPU/EUP).
    m = jnp.max(score, axis=-1, keepdims=True)
    shifted = score - m
    lse = jnp.log(jnp.sum(jnp.exp(shifted), axis=-1, keepdims=True))
    out_ref[...] = shifted - lse


def _pick_b_tile(B):
    """Batch tile: full block for tiny B, otherwise the largest of
    (1024, 512, 256) that still yields >= 2 grid steps (megacore on v7x),
    falling back to 128."""
    if B <= 128:
        return B
    for cand in (1024, 512, 256):
        if pl.cdiv(B, cand) >= 2:
            return cand
    return 128


def simplenet_forward(x_nchw, filters, *, b_tile=None):
    """x_nchw: (B, C, H, W); filters: (NC, K, C, H, W). Returns (B, NC)."""
    B = x_nchw.shape[0]
    NC, K = filters.shape[0], filters.shape[1]
    D = x_nchw.size // B

    x2d = x_nchw.reshape(B, D).astype(jnp.float32)
    # Hoisted filter mean: tiny (NC, D) reduction done once, outside the grid.
    f_mean = (
        jnp.sum(filters.reshape(NC, K, D).astype(jnp.float32), axis=1)
        / jnp.float32(K)
    )  # (NC, D)

    if b_tile is None:
        b_tile = _pick_b_tile(B)

    # Pad B up to a multiple of b_tile (zero rows -> finite garbage logits,
    # sliced away below) so any batch size pipelines cleanly.
    n_blocks = pl.cdiv(B, b_tile)
    B_pad = n_blocks * b_tile
    if B_pad != B:
        x2d = jnp.pad(x2d, ((0, B_pad - B), (0, 0)))
    grid = (n_blocks,)

    # Advisory cost (post filter-mean hoist) so XLA schedules/overlaps this
    # small, HBM-bound call sensibly.
    cost = pl.CostEstimate(
        flops=int(2 * B_pad * NC * D + 8 * B_pad * NC),
        transcendentals=int(B_pad * NC),
        bytes_accessed=int((B_pad * D + NC * D + B_pad * NC) * 4),
    )

    # Rough working set: double-buffered x tile + filter + double-buffered out.
    vmem_needed = 2 * b_tile * D * 4 + NC * D * 4 + 2 * b_tile * NC * 4
    vmem_limit = None
    if vmem_needed > 12 * 1024 * 1024:
        # Only needed near v5e's 16 MiB default scoped VMEM (b_tile=1024).
        vmem_limit = 32 * 1024 * 1024

    out = pl.pallas_call(
        _simplenet_kernel,
        out_shape=jax.ShapeDtypeStruct((B_pad, NC), jnp.float32),
        grid_spec=pltpu.PrefetchScalarGridSpec(
            num_scalar_prefetch=0,
            grid=grid,
            in_specs=[
                pl.BlockSpec((b_tile, D), lambda i: (i, 0)),
                pl.BlockSpec((NC, D), lambda i: (0, 0)),
            ],
            out_specs=pl.BlockSpec((b_tile, NC), lambda i: (i, 0)),
        ),
        compiler_params=pltpu.CompilerParams(
            dimension_semantics=("parallel",),
            vmem_limit_bytes=vmem_limit,
        ),
        cost_estimate=cost,
    )(x2d, f_mean)

    return out[:B]


def _reference(x_nchw, filters):
    B = x_nchw.shape[0]
    NC, K = filters.shape[0], filters.shape[1]
    x2d = x_nchw.reshape(B, -1).astype(jnp.float32)
    fm = (jnp.sum(filters, axis=1) / K).reshape(NC, -1).astype(jnp.float32)
    score = x2d @ fm.T
    return jax.nn.log_softmax(score, axis=-1)


if __name__ == "__main__":
    key = jax.random.PRNGKey(0)
    kx, kf, kx2 = jax.random.split(key, 3)

    # Small, deterministic shapes consistent with the module's forward.
    B, C, H, W = 8, 4, 16, 16     # input NCHW  (D = C*H*W = 1024)
    NC, K = 8, 4                  # filters: (num_classes, K, C, H, W)

    x = jax.random.normal(kx, (B, C, H, W), dtype=jnp.float32)
    filters = jax.random.normal(kf, (NC, K, C, H, W), dtype=jnp.float32)

    out = simplenet_forward(x, filters)
    out = jax.block_until_ready(out)
    ref = _reference(x, filters)
    assert out.shape == (B, NC)
    assert jnp.allclose(out, ref, atol=1e-4, rtol=1e-4), "mismatch vs reference"

    # Exercise the padded / multi-step grid path (non-divisible batch).
    B2 = 200
    x2 = jax.random.normal(kx2, (B2, C, H, W), dtype=jnp.float32)
    out2 = jax.block_until_ready(simplenet_forward(x2, filters))
    ref2 = _reference(x2, filters)
    assert out2.shape == (B2, NC)
    assert jnp.allclose(out2, ref2, atol=1e-4, rtol=1e-4), "mismatch (padded path)"

    print("KERNEL_OK")
</pallas_src>

<mosaic_0001>
module attributes {stable_mosaic.version = 11 : i64} {
  func.func @_simplenet_kernel(%arg0: i32, %arg1: memref<8x1024xf32, #tpu.memory_space<vmem>>, %arg2: memref<8x1024xf32, #tpu.memory_space<vmem>>, %arg3: memref<8x8xf32, #tpu.memory_space<vmem>>) attributes {dimension_semantics = [#tpu.dimension_semantics<parallel>], iteration_bounds = array<i64: 1>, scalar_prefetch = 0 : i64, scratch_operands = 0 : i64, tpu.core_type = #tpu.core_type<tc>, window_params = [{transform_indices = @transform_0, window_bounds = array<i64: 8, 1024>}, {pipeline_mode = #tpu.pipeline_mode<synchronous>, transform_indices = @transform_1, window_bounds = array<i64: 8, 1024>}, {transform_indices = @transform_2, window_bounds = array<i64: 8, 8>}]} {
    %c0 = arith.constant 0 : index
    %c0_0 = arith.constant 0 : index
    %0 = vector.load %arg1[%c0, %c0_0] : memref<8x1024xf32, #tpu.memory_space<vmem>>, vector<8x1024xf32>
    %c0_1 = arith.constant 0 : index
    %c0_2 = arith.constant 0 : index
    %1 = vector.load %arg2[%c0_1, %c0_2] : memref<8x1024xf32, #tpu.memory_space<vmem>>, vector<8x1024xf32>
    %cst = arith.constant dense<0.000000e+00> : vector<8x8xf32>
    %2 = tpu.matmul %0, %1, %cst {dimension_numbers = #tpu.dot_dimension_numbers<[1], [1], [0], [0], [0, 0, 1, 0], [], []>} : vector<8x1024xf32>, vector<8x1024xf32>, vector<8x8xf32> -> vector<8x8xf32>
    %cst_3 = arith.constant dense<0xFF800000> : vector<8xf32>
    %3 = vector.multi_reduction <maximumf>, %2, %cst_3 [1] : vector<8x8xf32> to vector<8xf32>
    %4 = vector.shape_cast %3 : vector<8xf32> to vector<8x1xf32>
    %5 = vector.broadcast %4 : vector<8x1xf32> to vector<8x8xf32>
    %6 = arith.subf %2, %5 : vector<8x8xf32>
    %7 = math.exp %6 : vector<8x8xf32>
    %cst_4 = arith.constant dense<0.000000e+00> : vector<8xf32>
    %8 = vector.multi_reduction <add>, %7, %cst_4 [1] : vector<8x8xf32> to vector<8xf32>
    %9 = vector.shape_cast %8 : vector<8xf32> to vector<8x1xf32>
    %10 = math.log %9 : vector<8x1xf32>
    %11 = vector.broadcast %10 : vector<8x1xf32> to vector<8x8xf32>
    %12 = arith.subf %6, %11 : vector<8x8xf32>
    %c0_5 = arith.constant 0 : index
    %c0_6 = arith.constant 0 : index
    %13 = vector.load %arg3[%c0_5, %c0_6] : memref<8x8xf32, #tpu.memory_space<vmem>>, vector<8x8xf32>
    tpu.vector_store %arg3[%c0_5, %c0_6], %12 {strides = array<i32>} : memref<8x8xf32, #tpu.memory_space<vmem>>, vector<8x8xf32>,
    return
  }
  func.func @transform_0(%arg0: i32) -> (i32, i32) {
    %c0_i32 = arith.constant 0 : i32
    %c0_i32_0 = arith.constant 0 : i32
    return %arg0, %c0_i32 : i32, i32
  }
  func.func @transform_1(%arg0: i32) -> (i32, i32) {
    %c0_i32 = arith.constant 0 : i32
    %c0_i32_0 = arith.constant 0 : i32
    %c0_i32_1 = arith.constant 0 : i32
    return %c0_i32, %c0_i32_0 : i32, i32
  }
  func.func @transform_2(%arg0: i32) -> (i32, i32) {
    %c0_i32 = arith.constant 0 : i32
    %c0_i32_0 = arith.constant 0 : i32
    return %arg0, %c0_i32 : i32, i32
  }
}

</mosaic_0001>

<llo_original>
// kernel: tpu_custom_call.1
$region0: #{tpu_custom_call.1}
  #allocation0 [shape = 'u32[]', space=smem, size = 0x4, offset = 0x4, fixed_abs, tag = 'smem constant byte address 0x4 - core index']
  #allocation1 [shape = 'u32[72,128]{1,0:T(1,128)}', space=vmem, size = 0x9000, scoped, tag = 'internal scratch']
  %s0 = inlined_call_operand.hbm [shape: f32[8,1024], index: 0, kind: input, shape index: {}]
  %s1 = inlined_call_operand.hbm [shape: f32[8,1024], index: 1, kind: input, shape index: {}]
  %s2 = inlined_call_operand.hbm [shape: f32[8,8], index: 2, kind: output, shape index: {}]
  %s3 = sld [smem:[#allocation0]]
  $region26: #{tpu_custom_call.1} parent=0
    _
  %s5 = ssub.s32 1, %s3
  %s6 = scalar_select 0, %s5, %s3
  $region1: #{tpu_custom_call.1} parent=0
    #allocation2 [shape = 'u8[32768]{0}', space=vmem, size = 0x8000, scoped, tag = 'input window, operand 0, single buffered']
    #allocation3 [shape = 's32[1]{0}', space=sflag, size = 0x4, scoped, tag = 'scoped memory for tpu_custom_call.1']
    #allocation4 [shape = 's32[1]{0}', space=sflag, size = 0x4, scoped, tag = 'scoped memory for tpu_custom_call.1']
    #allocation5 [shape = 'u8[32768]{0}', space=vmem, size = 0x8000, scoped, tag = 'input window, operand 1, single buffered']
    #allocation6 [shape = 's32[1]{0}', space=sflag, size = 0x4, scoped, tag = 'scoped memory for tpu_custom_call.1']
    #allocation7 [shape = 'u8[4096]{0}', space=vmem, size = 0x1000, scoped, tag = 'output window, operand 0, single buffered']
    %7 = vsyncpa [#allocation3], 0
    %8 = vsyncpa [#allocation6], 0
    %9 = vsyncpa [#allocation4], 0
    // Predicated region
    $region2: #{tpu_custom_call.1} parent=1 // pred_check
      _
    $region3: #{tpu_custom_call.1} parent=1 // pred_check_branch
      %11 = sbr.rel (0) target = $region5
    $region4: #{tpu_custom_call.1} parent=1 // pred_region
      %13 = vsyncadd [#allocation3], 0
      %s15 = sshll.u32 %s0, 4
      %s16 = int_to_ptr.hbm [resolvable:$true] %s15
      %s17 = sshll.u32 [#allocation2], 4
      %s18 = int_to_ptr.vmem [resolvable:$true] %s17
      %20 = dma.hbm_to_vmem [thread:$0]  %s16, 1024, %s18, [#allocation3]
    $region5: #{tpu_custom_call.1} parent=1 // pred_fallthru
      _
    // Predicated region
    $region6: #{tpu_custom_call.1} parent=1 // pred_check
      _
    $region7: #{tpu_custom_call.1} parent=1 // pred_check_branch
      %22 = sbr.rel (0) target = $region9
    $region8: #{tpu_custom_call.1} parent=1 // pred_region
      %24 = vsyncadd [#allocation6], 0
      %s26 = sshll.u32 %s1, 4
      %s27 = int_to_ptr.hbm [resolvable:$true] %s26
      %s28 = sshll.u32 [#allocation5], 4
      %s29 = int_to_ptr.vmem [resolvable:$true] %s28
      %31 = dma.hbm_to_vmem [thread:$0]  %s27, 1024, %s29, [#allocation6]
    $region9: #{tpu_custom_call.1} parent=1 // pred_fallthru
      _
    // Predicated region
    $region10: #{tpu_custom_call.1} parent=1 // pred_check
      _
    $region11: #{tpu_custom_call.1} parent=1 // pred_check_branch
      %33 = sbr.rel (0) target = $region13
    $region12: #{tpu_custom_call.1} parent=1 // pred_region
      %35 = dma.done [#allocation3], 1024
    $region13: #{tpu_custom_call.1} parent=1 // pred_fallthru
      _
    // Predicated region
    $region14: #{tpu_custom_call.1} parent=1 // pred_check
      _
    $region15: #{tpu_custom_call.1} parent=1 // pred_check_branch
      %37 = sbr.rel (0) target = $region17
    $region16: #{tpu_custom_call.1} parent=1 // pred_region
      %39 = dma.done [#allocation6], 1024
    $region17: #{tpu_custom_call.1} parent=1 // pred_fallthru
      _
    %v40 = vld [vmem:[#allocation2] sm:$0xff]
    %v41 = vld [vmem:[#allocation2 + $0x8] sm:$0xff]
    %v42 = vld [vmem:[#allocation2 + $0x10] sm:$0xff]
    %v43 = vld [vmem:[#allocation2 + $0x18] sm:$0xff]
    %v44 = vld [vmem:[#allocation2 + $0x20] sm:$0xff]
    %v45 = vld [vmem:[#allocation2 + $0x28] sm:$0xff]
    %v46 = vld [vmem:[#allocation2 + $0x30] sm:$0xff]
    %v47 = vld [vmem:[#allocation2 + $0x38] sm:$0xff]
    %v48 = vld [vmem:[#allocation5] sm:$0xff]
    %v49 = vld [vmem:[#allocation5 + $0x8] sm:$0xff]
    %v50 = vld [vmem:[#allocation5 + $0x10] sm:$0xff]
    %v51 = vld [vmem:[#allocation5 + $0x18] sm:$0xff]
    %v52 = vld [vmem:[#allocation5 + $0x20] sm:$0xff]
    %v53 = vld [vmem:[#allocation5 + $0x28] sm:$0xff]
    %v54 = vld [vmem:[#allocation5 + $0x30] sm:$0xff]
    %v55 = vld [vmem:[#allocation5 + $0x38] sm:$0xff]
    %56 = vmatpush.xpose.msra.mxu0 0.0
    %57 = vmatpush.xpose.msra.mxu0 0.0
    %58 = vmatpush.xpose.msra.mxu0 0.0
    %59 = vmatpush.xpose.msra.mxu0 0.0
    %60 = vmatpush.xpose.msra.mxu0 0.0
    %61 = vmatpush.xpose.msra.mxu0 0.0
    %62 = vmatpush.xpose.msra.mxu0 0.0
    %63 = vmatpush.xpose.msra.mxu0 0.0
    %64 = vmatpush.xpose.msra.mxu0 0.0
    %65 = vmatpush.xpose.msra.mxu0 0.0
    %66 = vmatpush.xpose.msra.mxu0 0.0
    %67 = vmatpush.xpose.msra.mxu0 0.0
    %68 = vmatpush.xpose.msra.mxu0 0.0
    %69 = vmatpush.xpose.msra.mxu0 0.0
    %70 = vmatpush.xpose.msra.mxu0 0.0
    %71 = vmatpush.xpose.msra.mxu0 %v48
    %72 = vmatmul.f32.gmra.mxu0 %v40
    %v73 = vpop.f32.mrf.mxu0
    %v74 = vadd.f32 0.0, %v73
    %75 = vdwg.mxu0
    %76 = vmatpush.xpose.msra.mxu0 0.0
    %77 = vmatpush.xpose.msra.mxu0 0.0
    %78 = vmatpush.xpose.msra.mxu0 0.0
    %79 = vmatpush.xpose.msra.mxu0 0.0
    %80 = vmatpush.xpose.msra.mxu0 0.0
    %81 = vmatpush.xpose.msra.mxu0 0.0
    %82 = vmatpush.xpose.msra.mxu0 0.0
    %83 = vmatpush.xpose.msra.mxu0 0.0
    %84 = vmatpush.xpose.msra.mxu0 0.0
    %85 = vmatpush.xpose.msra.mxu0 0.0
    %86 = vmatpush.xpose.msra.mxu0 0.0
    %87 = vmatpush.xpose.msra.mxu0 0.0
    %88 = vmatpush.xpose.msra.mxu0 0.0
    %89 = vmatpush.xpose.msra.mxu0 0.0
    %90 = vmatpush.xpose.msra.mxu0 0.0
    %91 = vmatpush.xpose.msra.mxu0 %v49
    %92 = vmatmul.f32.gmra.mxu0 %v41
    %v93 = vpop.f32.mrf.mxu0
    %v94 = vadd.f32 %v74, %v93
    %95 = vdwg.mxu0
    %96 = vmatpush.xpose.msra.mxu0 0.0
    %97 = vmatpush.xpose.msra.mxu0 0.0
    %98 = vmatpush.xpose.msra.mxu0 0.0
    %99 = vmatpush.xpose.msra.mxu0 0.0
    %100 = vmatpush.xpose.msra.mxu0 0.0
    %101 = vmatpush.xpose.msra.mxu0 0.0
    %102 = vmatpush.xpose.msra.mxu0 0.0
    %103 = vmatpush.xpose.msra.mxu0 0.0
    %104 = vmatpush.xpose.msra.mxu0 0.0
    %105 = vmatpush.xpose.msra.mxu0 0.0
    %106 = vmatpush.xpose.msra.mxu0 0.0
    %107 = vmatpush.xpose.msra.mxu0 0.0
    %108 = vmatpush.xpose.msra.mxu0 0.0
    %109 = vmatpush.xpose.msra.mxu0 0.0
    %110 = vmatpush.xpose.msra.mxu0 0.0
    %111 = vmatpush.xpose.msra.mxu0 %v50
    %112 = vmatmul.f32.gmra.mxu0 %v42
    %v113 = vpop.f32.mrf.mxu0
    %v114 = vadd.f32 %v94, %v113
    %115 = vdwg.mxu0
    %116 = vmatpush.xpose.msra.mxu0 0.0
    %117 = vmatpush.xpose.msra.mxu0 0.0
    %118 = vmatpush.xpose.msra.mxu0 0.0
    %119 = vmatpush.xpose.msra.mxu0 0.0
    %120 = vmatpush.xpose.msra.mxu0 0.0
    %121 = vmatpush.xpose.msra.mxu0 0.0
    %122 = vmatpush.xpose.msra.mxu0 0.0
    %123 = vmatpush.xpose.msra.mxu0 0.0
    %124 = vmatpush.xpose.msra.mxu0 0.0
    %125 = vmatpush.xpose.msra.mxu0 0.0
    %126 = vmatpush.xpose.msra.mxu0 0.0
    %127 = vmatpush.xpose.msra.mxu0 0.0
    %128 = vmatpush.xpose.msra.mxu0 0.0
    %129 = vmatpush.xpose.msra.mxu0 0.0
    %130 = vmatpush.xpose.msra.mxu0 0.0
    %131 = vmatpush.xpose.msra.mxu0 %v51
    %132 = vmatmul.f32.gmra.mxu0 %v43
    %v133 = vpop.f32.mrf.mxu0
    %v134 = vadd.f32 %v114, %v133
    %135 = vdwg.mxu0
    %136 = vmatpush.xpose.msra.mxu0 0.0
    %137 = vmatpush.xpose.msra.mxu0 0.0
    %138 = vmatpush.xpose.msra.mxu0 0.0
    %139 = vmatpush.xpose.msra.mxu0 0.0
    %140 = vmatpush.xpose.msra.mxu0 0.0
    %141 = vmatpush.xpose.msra.mxu0 0.0
    %142 = vmatpush.xpose.msra.mxu0 0.0
    %143 = vmatpush.xpose.msra.mxu0 0.0
    %144 = vmatpush.xpose.msra.mxu0 0.0
    %145 = vmatpush.xpose.msra.mxu0 0.0
    %146 = vmatpush.xpose.msra.mxu0 0.0
    %147 = vmatpush.xpose.msra.mxu0 0.0
    %148 = vmatpush.xpose.msra.mxu0 0.0
    %149 = vmatpush.xpose.msra.mxu0 0.0
    %150 = vmatpush.xpose.msra.mxu0 0.0
    %151 = vmatpush.xpose.msra.mxu0 %v52
    %152 = vmatmul.f32.gmra.mxu0 %v44
    %v153 = vpop.f32.mrf.mxu0
    %v154 = vadd.f32 %v134, %v153
    %155 = vdwg.mxu0
    %156 = vmatpush.xpose.msra.mxu0 0.0
    %157 = vmatpush.xpose.msra.mxu0 0.0
    %158 = vmatpush.xpose.msra.mxu0 0.0
    %159 = vmatpush.xpose.msra.mxu0 0.0
    %160 = vmatpush.xpose.msra.mxu0 0.0
    %161 = vmatpush.xpose.msra.mxu0 0.0
    %162 = vmatpush.xpose.msra.mxu0 0.0
    %163 = vmatpush.xpose.msra.mxu0 0.0
    %164 = vmatpush.xpose.msra.mxu0 0.0
    %165 = vmatpush.xpose.msra.mxu0 0.0
    %166 = vmatpush.xpose.msra.mxu0 0.0
    %167 = vmatpush.xpose.msra.mxu0 0.0
    %168 = vmatpush.xpose.msra.mxu0 0.0
    %169 = vmatpush.xpose.msra.mxu0 0.0
    %170 = vmatpush.xpose.msra.mxu0 0.0
    %171 = vmatpush.xpose.msra.mxu0 %v53
    %172 = vmatmul.f32.gmra.mxu0 %v45
    %v173 = vpop.f32.mrf.mxu0
    %v174 = vadd.f32 %v154, %v173
    %175 = vdwg.mxu0
    %176 = vmatpush.xpose.msra.mxu0 0.0
    %177 = vmatpush.xpose.msra.mxu0 0.0
    %178 = vmatpush.xpose.msra.mxu0 0.0
    %179 = vmatpush.xpose.msra.mxu0 0.0
    %180 = vmatpush.xpose.msra.mxu0 0.0
    %181 = vmatpush.xpose.msra.mxu0 0.0
    %182 = vmatpush.xpose.msra.mxu0 0.0
    %183 = vmatpush.xpose.msra.mxu0 0.0
    %184 = vmatpush.xpose.msra.mxu0 0.0
    %185 = vmatpush.xpose.msra.mxu0 0.0
    %186 = vmatpush.xpose.msra.mxu0 0.0
    %187 = vmatpush.xpose.msra.mxu0 0.0
    %188 = vmatpush.xpose.msra.mxu0 0.0
    %189 = vmatpush.xpose.msra.mxu0 0.0
    %190 = vmatpush.xpose.msra.mxu0 0.0
    %191 = vmatpush.xpose.msra.mxu0 %v54
    %192 = vmatmul.f32.gmra.mxu0 %v46
    %v193 = vpop.f32.mrf.mxu0
    %v194 = vadd.f32 %v174, %v193
    %195 = vdwg.mxu0
    %196 = vmatpush.xpose.msra.mxu0 0.0
    %197 = vmatpush.xpose.msra.mxu0 0.0
    %198 = vmatpush.xpose.msra.mxu0 0.0
    %199 = vmatpush.xpose.msra.mxu0 0.0
    %200 = vmatpush.xpose.msra.mxu0 0.0
    %201 = vmatpush.xpose.msra.mxu0 0.0
    %202 = vmatpush.xpose.msra.mxu0 0.0
    %203 = vmatpush.xpose.msra.mxu0 0.0
    %204 = vmatpush.xpose.msra.mxu0 0.0
    %205 = vmatpush.xpose.msra.mxu0 0.0
    %206 = vmatpush.xpose.msra.mxu0 0.0
    %207 = vmatpush.xpose.msra.mxu0 0.0
    %208 = vmatpush.xpose.msra.mxu0 0.0
    %209 = vmatpush.xpose.msra.mxu0 0.0
    %210 = vmatpush.xpose.msra.mxu0 0.0
    %211 = vmatpush.xpose.msra.mxu0 %v55
    %212 = vmatmul.f32.gmra.mxu0 %v47
    %v213 = vpop.f32.mrf.mxu0
    %v214 = vadd.f32 %v194, %v213
    %215 = vdwg.mxu0
    %vm216 = vcmask 64512
    %v217 = vsel %vm216, %v214, -inf
    %218 = vmax.xlane.f32.xlu0 %v217
    %v219 = vpop.xlane.xlu0 %218
    %v220 = vsub.f32 %v214, %v219
    %v221 = vmul.f32 %v220, 1.442695
    %v222 = vpow.pop %v221
    %v223 = vsel %vm216, %v222, 0.0
    %224 = vadd.xlane.f32.xlu0 %v223
    %v225 = vpop.xlane.xlu0 %224
    %v226 = vlog2.pop %v225
    %v227 = vmul.f32 %v226, 0.6931472
    %v228 = vsub.f32 %v220, %v227
    %229 = vst.msk [vmem:[#allocation7] sm:$0xff] %vm216, %v228
    // Predicated region
    $region18: #{tpu_custom_call.1} parent=1 // pred_check
      _
    $region19: #{tpu_custom_call.1} parent=1 // pred_check_branch
      %231 = sbr.rel (0) target = $region21
    $region20: #{tpu_custom_call.1} parent=1 // pred_region
      %233 = vsyncadd [#allocation4], 0
      %s235 = sshll.u32 [#allocation7], 4
      %s236 = int_to_ptr.vmem [resolvable:$true] %s235
      %s237 = sshll.u32 %s2, 4
      %s238 = int_to_ptr.hbm [resolvable:$true] %s237
      %240 = dma.vmem_to_hbm [thread:$0]  %s236, 128, %s238, [#allocation4]
    $region21: #{tpu_custom_call.1} parent=1 // pred_fallthru
      _
    // Predicated region
    $region22: #{tpu_custom_call.1} parent=1 // pred_check
      _
    $region23: #{tpu_custom_call.1} parent=1 // pred_check_branch
      %242 = sbr.rel (0) target = $region25
    $region24: #{tpu_custom_call.1} parent=1 // pred_region
      %244 = dma.done [#allocation4], 128
    $region25: #{tpu_custom_call.1} parent=1 // pred_fallthru
      _
    %245 = vsyncpa [#allocation3], 1
    %246 = vsyncpa [#allocation6], 1
    %247 = vsyncpa [#allocation4], 1

</llo_original>
